<compile_context>
chip_gen: v5e
topology: v5e:2x2
jax: 0.10.0
libtpu: 0.0.40
codegen_flags: <defaults>
</compile_context>

<pallas_src>
import functools

import jax
import jax.numpy as jnp
from jax import lax
from jax.experimental import pallas as pl
from jax.experimental.pallas import tpu as pltpu

HOPS = 3
HEADS = 4
LN_EPS = 1e-5
NODE_TILE = 1024   # power-of-two multiple of 128; shrunk automatically for small N


def _round_up(n, m):
    return (n + m - 1) // m * m


def _vmem_limit_bytes():
    """Generation-aware scoped-VMEM limit: ~3/4 of physical, capped at 96 MiB."""
    cap = 64 * 1024 * 1024
    try:
        cap = int(getattr(pltpu.get_tpu_info(), "vmem_capacity_bytes", cap))
    except Exception:
        pass
    return int(max(32 * 1024 * 1024, min(cap * 3 // 4, 96 * 1024 * 1024)))


def _pick_tile(n, tile):
    """Node tile: <= `tile`, multiple of 128, and >=4 blocks when possible (v7x)."""
    t = tile
    while t > 128 and _round_up(n, t) // t < 4:
        t //= 2
    return t


# ---------------------------------------------------------------------------
# Kernel 1: one hop of propagation,  y^T = h^T @ adj^T,  blocked over (cols, K).
# h^T (in_dim, np_) is tiny -> resident once (constant index map), sliced with
# pl.ds; adj^T is the dominant HBM stream; output (in_dim, t) is lane-dense.
# ---------------------------------------------------------------------------
def _prop_kernel(h_ref, adjT_ref, o_ref, acc_ref, *, tk):
    k = pl.program_id(1)

    @pl.when(k == 0)
    def _():
        acc_ref[...] = jnp.zeros_like(acc_ref)

    kk = pl.multiple_of(k * tk, 128)
    acc_ref[...] += jnp.dot(h_ref[:, pl.ds(kk, tk)], adjT_ref[...],
                            preferred_element_type=jnp.float32)

    @pl.when(k == pl.num_programs(1) - 1)
    def _():
        o_ref[...] = acc_ref[...].astype(o_ref.dtype)


def prop_matmul(hT, adjT, *, tile):
    in_dim, np_ = hT.shape
    nb = np_ // tile
    # TODO(synk): on v7x the 0/1 adjacency could be stored fp8 (e4m3 is exact for
    # 0/1) to halve the dominant HBM stream; kept bf16 for portability here.
    return pl.pallas_call(
        functools.partial(_prop_kernel, tk=tile),
        out_shape=jax.ShapeDtypeStruct((in_dim, np_), jnp.bfloat16),
        grid_spec=pltpu.PrefetchScalarGridSpec(
            num_scalar_prefetch=0,
            grid=(nb, nb),
            in_specs=[pl.BlockSpec((in_dim, np_), lambda j, k: (0, 0)),
                      pl.BlockSpec((tile, tile), lambda j, k: (k, j))],
            out_specs=pl.BlockSpec((in_dim, tile), lambda j, k: (0, j)),
            scratch_shapes=[pltpu.VMEM((in_dim, tile), jnp.float32)]),
        compiler_params=pltpu.CompilerParams(
            dimension_semantics=("parallel", "arbitrary"),
            vmem_limit_bytes=_vmem_limit_bytes()),
    )(hT, adjT)


# ---------------------------------------------------------------------------
# Kernel 2: embedding + interaction-attention layers + fusion, per node tile.
# Everything is (features, nodes): weights multiply from the left, node tile is
# the (full-lane) MXU N dimension, and the output block (P, t) is lane-dense.
# ---------------------------------------------------------------------------
def model_kernel(h0a_ref, h0b_ref, h0c_ref, wfcT_ref, bfc_ref, posT_ref,
                 gammaT_ref, betaT_ref, wqkvT_ref, out_ref,
                 *, nlayers, proj_dim, heads):
    P = proj_dim
    dh = P // heads
    scale = dh ** (-0.5)
    t = out_ref.shape[1]
    h0_refs = (h0a_ref, h0b_ref, h0c_ref)

    def layernorm(v, idx):                      # v: (P, t) f32; LN over feature rows
        gam = gammaT_ref[:, idx:idx + 1]        # (P, 1) broadcast over lanes
        bet = betaT_ref[:, idx:idx + 1]
        mu = jnp.mean(v, axis=0, keepdims=True)
        var = jnp.mean((v - mu) ** 2, axis=0, keepdims=True)
        return (v - mu) * lax.rsqrt(var + LN_EPS) * gam + bet

    # ---- embedding: dropout(identity) -> fc -> +pos -> LayerNorm[0], per hop ----
    bias = bfc_ref[...]                                         # (P, 1)
    h = []
    for a in range(HOPS):
        e = jnp.dot(wfcT_ref[...], h0_refs[a][...],
                    preferred_element_type=jnp.float32)         # (P, t) f32
        e = e + bias + posT_ref[:, a:a + 1]
        h.append(layernorm(e, 0))

    def head_dot(qa, kb):                        # per-head <q,k> per node: (heads, t)
        s = (qa * kb).reshape(heads, dh, t)      # free reshape: dh == 8-row groups
        return jnp.sum(s, axis=1)

    # ---- interaction layers: 4-head attention over the hop axis, per node ----
    # TODO(synk): replace the static Python layer loop with lax.fori_loop +
    # dynamic wqkv slicing if nlayers grows beyond a handful.
    for li in range(nlayers):
        w = wqkvT_ref[li]                                       # (3P, P) bf16
        q, k, v = [], [], []
        for a in range(HOPS):
            qkv = jnp.dot(w, h[a].astype(jnp.bfloat16),
                          preferred_element_type=jnp.float32)   # (3P, t) f32
            q.append(qkv[0:P, :] * scale)
            k.append(qkv[P:2 * P, :])
            v.append(qkv[2 * P:3 * P, :])

        new_h = []
        for a in range(HOPS):
            logits = [head_dot(q[a], k[b]) for b in range(HOPS)]   # each (heads, t)
            m = logits[0]
            for b in range(1, HOPS):
                m = jnp.maximum(m, logits[b])
            es = [jnp.exp(logits[b] - m) for b in range(HOPS)]
            den = es[0]
            for b in range(1, HOPS):
                den = den + es[b]
            inv = pl.reciprocal(den, approx=True)                  # (heads, t)

            attn_a = None
            for b in range(HOPS):
                wgt = (es[b] * inv).reshape(heads, 1, t)           # broadcast over dh
                term = (wgt * v[b].reshape(heads, dh, t)).reshape(P, t)
                attn_a = term if attn_a is None else attn_a + term

            # relu + residual + LayerNorm[li+1]
            new_h.append(layernorm(jnp.maximum(attn_a, 0.0) + h[a], li + 1))
        h = new_h

    # ---- fusion: dropout(identity) -> mean over the hop axis ----
    acc = h[0]
    for a in range(1, HOPS):
        acc = acc + h[a]
    out_ref[...] = (acc * (1.0 / HOPS)).astype(out_ref.dtype)


def transformer_model_forward(x, edge_index, params, *, tile=NODE_TILE):
    """Full TransformerModel.forward (eval mode). Returns (N, proj_dim)."""
    N, in_dim = x.shape
    P = params["wfc"].shape[1]
    nlayers = params["wqkv"].shape[0]

    # glue: dense adjacency from edge_index, built directly transposed.
    # TODO(synk): edge_index_to_adj is not defined in the reference; a plain 0/1
    # adjacency A[dst, src] = 1 is used (no degree normalization).
    adjT = jnp.zeros((N, N), jnp.float32).at[edge_index[0], edge_index[1]].set(1.0)

    # Node tile (lane axis): multiple of 128, >=4 blocks when N allows (v7x TCs).
    t = _pick_tile(N, tile)
    np_ = _round_up(N, t)
    pad = np_ - N

    xT = jnp.pad(x.T, ((0, 0), (0, pad))).astype(jnp.bfloat16)        # (in_dim, np_)
    adjTp = jnp.pad(adjT, ((0, pad), (0, pad))).astype(jnp.bfloat16)  # (np_, np_)

    # Kernel 1: hop propagation (bf16 intermediates). Hops stay as separate
    # (in_dim, np_) arrays -> no stack / interleave copy in HBM.
    hops = [xT]
    for _ in range(HOPS - 1):
        hops.append(prop_matmul(hops[-1], adjTp, tile=t))

    # Small parameter repacks (all "weight applied from the left" orientation).
    wfcT = params["wfc"].T.astype(jnp.bfloat16)                       # (P, in_dim)
    bfcT = params["bfc"].reshape(P, 1).astype(jnp.float32)            # (P, 1)
    posT = params["pos"].T.astype(jnp.float32)                        # (P, HOPS)
    gammaT = params["gamma"].T.astype(jnp.float32)                    # (P, nlayers+1)
    betaT = params["beta"].T.astype(jnp.float32)
    wqkvT = (jnp.transpose(params["wqkv"], (0, 1, 3, 2))
             .reshape(nlayers, 3 * P, P).astype(jnp.bfloat16))        # (nlayers, 3P, P)

    nb = np_ // t
    kernel = functools.partial(model_kernel, nlayers=nlayers, proj_dim=P, heads=HEADS)
    outT = pl.pallas_call(
        kernel,
        out_shape=jax.ShapeDtypeStruct((P, np_), jnp.float32),
        grid_spec=pltpu.PrefetchScalarGridSpec(
            num_scalar_prefetch=0,
            grid=(nb,),
            in_specs=(
                [pl.BlockSpec((in_dim, t), lambda i: (0, i)) for _ in range(HOPS)]
                + [pl.BlockSpec((P, in_dim), lambda i: (0, 0)),
                   pl.BlockSpec((P, 1), lambda i: (0, 0)),
                   pl.BlockSpec((P, HOPS), lambda i: (0, 0)),
                   pl.BlockSpec((P, nlayers + 1), lambda i: (0, 0)),
                   pl.BlockSpec((P, nlayers + 1), lambda i: (0, 0)),
                   pl.BlockSpec((nlayers, 3 * P, P), lambda i: (0, 0, 0))]),
            out_specs=pl.BlockSpec((P, t), lambda i: (0, i)),
        ),
        compiler_params=pltpu.CompilerParams(
            dimension_semantics=("parallel",),
            vmem_limit_bytes=_vmem_limit_bytes()),
    )(*hops, wfcT, bfcT, posT, gammaT, betaT, wqkvT)

    # Lane-dense (P, nodes) result; transpose back to the module's (N, P) layout.
    return outT[:, :N].T


if __name__ == "__main__":
    # Small shapes consistent with the module: N nodes, in_dim, proj_dim, 4 heads,
    # nlayers interaction layers, hops=3.  (ff_dim / out_dim / projector and the
    # extra norm layers are unused by forward().)
    N, in_dim, P, nlayers = 16, 16, 32, 2

    key = jax.random.PRNGKey(0)
    k_x, k_fc, k_pos, k_qkv = jax.random.split(key, 4)

    x = jax.random.normal(k_x, (N, in_dim), jnp.float32)

    # Deterministic ring graph, both directions.
    src = jnp.arange(N, dtype=jnp.int32)
    dst = (src + 1) % N
    edge_index = jnp.stack([jnp.concatenate([src, dst]),
                            jnp.concatenate([dst, src])], axis=0)

    params = {
        # fc: Linear(in_dim, proj_dim) -> weight stored transposed (in_dim, P)
        "wfc": jax.random.uniform(k_fc, (in_dim, P), jnp.float32, -0.1, 0.1),
        "bfc": jnp.zeros((1, P), jnp.float32),
        # pos_encoder: (1, hops, proj_dim) -> stored (hops, P)
        "pos": jax.random.normal(k_pos, (HOPS, P), jnp.float32),
        # LayerNorm params for norm indices 0..nlayers (the ones used by forward)
        "gamma": jnp.ones((nlayers + 1, P), jnp.float32),
        "beta": jnp.zeros((nlayers + 1, P), jnp.float32),
        # to_qkv per layer: [Wq, Wk, Wv] each (P, P) applied as h @ W, init N(0, 0.05)
        "wqkv": 0.05 * jax.random.normal(k_qkv, (nlayers, 3, P, P), jnp.float32),
    }

    out = transformer_model_forward(x, edge_index, params)
    jax.block_until_ready(out)
    assert out.shape == (N, P) and bool(jnp.all(jnp.isfinite(out)))
    print("KERNEL_OK")
</pallas_src>

<mosaic_0001>
module attributes {stable_mosaic.version = 11 : i64} {
  func.func @_prop_kernel(%arg0: i32, %arg1: i32, %arg2: memref<16x128xbf16, #tpu.memory_space<vmem>>, %arg3: memref<128x128xbf16, #tpu.memory_space<vmem>>, %arg4: memref<16x128xbf16, #tpu.memory_space<vmem>>, %arg5: memref<16x128xf32, #tpu.memory_space<vmem>>) attributes {dimension_semantics = [#tpu.dimension_semantics<parallel>, #tpu.dimension_semantics<arbitrary>], iteration_bounds = array<i64: 1, 1>, scalar_prefetch = 0 : i64, scratch_operands = 1 : i64, tpu.core_type = #tpu.core_type<tc>, window_params = [{pipeline_mode = #tpu.pipeline_mode<synchronous>, transform_indices = @transform_0, window_bounds = array<i64: 16, 128>}, {transform_indices = @transform_1, window_bounds = array<i64: 128, 128>}, {transform_indices = @transform_2, window_bounds = array<i64: 16, 128>}]} {
    %c0_i32 = arith.constant 0 : i32
    %0 = arith.cmpi eq, %arg1, %c0_i32 : i32
    %1 = arith.extui %0 : i1 to i32
    %c0_i32_0 = arith.constant 0 : i32
    %2 = arith.cmpi ne, %1, %c0_i32_0 : i32
    scf.if %2 {
      %cst_9 = arith.constant 0.000000e+00 : f32
      %15 = vector.broadcast %cst_9 : f32 to vector<16x128xf32>
      %c0_10 = arith.constant 0 : index
      %c0_11 = arith.constant 0 : index
      %16 = vector.load %arg5[%c0_10, %c0_11] : memref<16x128xf32, #tpu.memory_space<vmem>>, vector<16x128xf32>
      tpu.vector_store %arg5[%c0_10, %c0_11], %15 {strides = array<i32>} : memref<16x128xf32, #tpu.memory_space<vmem>>, vector<16x128xf32>,
    } else {
    }
    %c128_i32 = arith.constant 128 : i32
    %3 = arith.muli %arg1, %c128_i32 : i32
    %4 = tpu.assume_multiple %3, 128 : i32
    %c0 = arith.constant 0 : index
    %c0_1 = arith.constant 0 : index
    %5 = vector.load %arg5[%c0, %c0_1] : memref<16x128xf32, #tpu.memory_space<vmem>>, vector<16x128xf32>
    %c0_2 = arith.constant 0 : index
    %6 = arith.index_cast %4 : i32 to index
    %7 = vector.load %arg2[%c0_2, %6] : memref<16x128xbf16, #tpu.memory_space<vmem>>, vector<16x128xbf16>
    %c0_3 = arith.constant 0 : index
    %c0_4 = arith.constant 0 : index
    %8 = vector.load %arg3[%c0_3, %c0_4] : memref<128x128xbf16, #tpu.memory_space<vmem>>, vector<128x128xbf16>
    %cst = arith.constant dense<0.000000e+00> : vector<16x128xf32>
    %9 = tpu.matmul %7, %8, %cst {dimension_numbers = #tpu.dot_dimension_numbers<[1], [0], [0], [1], [0, 0, 1, 1], [], []>} : vector<16x128xbf16>, vector<128x128xbf16>, vector<16x128xf32> -> vector<16x128xf32>
    %10 = arith.addf %5, %9 : vector<16x128xf32>
    %c0_5 = arith.constant 0 : index
    %c0_6 = arith.constant 0 : index
    %11 = vector.load %arg5[%c0_5, %c0_6] : memref<16x128xf32, #tpu.memory_space<vmem>>, vector<16x128xf32>
    tpu.vector_store %arg5[%c0_5, %c0_6], %10 {strides = array<i32>} : memref<16x128xf32, #tpu.memory_space<vmem>>, vector<16x128xf32>,
    %c0_i32_7 = arith.constant 0 : i32
    %12 = arith.cmpi eq, %arg1, %c0_i32_7 : i32
    %13 = arith.extui %12 : i1 to i32
    %c0_i32_8 = arith.constant 0 : i32
    %14 = arith.cmpi ne, %13, %c0_i32_8 : i32
    scf.if %14 {
      %c0_9 = arith.constant 0 : index
      %c0_10 = arith.constant 0 : index
      %15 = vector.load %arg5[%c0_9, %c0_10] : memref<16x128xf32, #tpu.memory_space<vmem>>, vector<16x128xf32>
      %16 = arith.truncf %15 : vector<16x128xf32> to vector<16x128xbf16>
      %c0_11 = arith.constant 0 : index
      %c0_12 = arith.constant 0 : index
      %17 = vector.load %arg4[%c0_11, %c0_12] : memref<16x128xbf16, #tpu.memory_space<vmem>>, vector<16x128xbf16>
      tpu.vector_store %arg4[%c0_11, %c0_12], %16 {strides = array<i32>} : memref<16x128xbf16, #tpu.memory_space<vmem>>, vector<16x128xbf16>,
    } else {
    }
    return
  }
  func.func @transform_0(%arg0: i32, %arg1: i32) -> (i32, i32) {
    %c0_i32 = arith.constant 0 : i32
    %c0_i32_0 = arith.constant 0 : i32
    %c0_i32_1 = arith.constant 0 : i32
    return %c0_i32, %c0_i32_0 : i32, i32
  }
  func.func @transform_1(%arg0: i32, %arg1: i32) -> (i32, i32) {
    %c0_i32 = arith.constant 0 : i32
    return %arg1, %arg0 : i32, i32
  }
  func.func @transform_2(%arg0: i32, %arg1: i32) -> (i32, i32) {
    %c0_i32 = arith.constant 0 : i32
    %c0_i32_0 = arith.constant 0 : i32
    return %c0_i32, %arg0 : i32, i32
  }
}

</mosaic_0001>

<llo_original>
// kernel: tpu_custom_call.1
$region0: #{tpu_custom_call.1}
  #allocation0 [shape = 'u32[]', space=smem, size = 0x4, offset = 0x4, fixed_abs, tag = 'smem constant byte address 0x4 - core index']
  #allocation1 [shape = 'u32[72,128]{1,0:T(1,128)}', space=vmem, size = 0x9000, scoped, tag = 'internal scratch']
  #allocation2 [shape = 'f32[16,128]{1,0:T(8,128)}', space=vmem, size = 0x2000, scoped, tag = 'scratch operand']
  %s0 = inlined_call_operand.hbm [shape: bf16[16,128], index: 0, kind: input, shape index: {}]
  %s1 = inlined_call_operand.hbm [shape: bf16[128,128], index: 1, kind: input, shape index: {}]
  %s2 = inlined_call_operand.hbm [shape: bf16[16,128], index: 2, kind: output, shape index: {}]
  %s3 = sld [smem:[#allocation0]]
  $region34: #{tpu_custom_call.1} parent=0
    _
  %s5 = ssub.s32 1, %s3
  %s6 = scalar_select 0, %s5, %s3
  $region1: #{tpu_custom_call.1} parent=0
    #allocation3 [shape = 'u8[4096]{0}', space=vmem, size = 0x1000, scoped, tag = 'input window, operand 0, single buffered']
    #allocation4 [shape = 's32[1]{0}', space=sflag, size = 0x4, scoped, tag = 'scoped memory for tpu_custom_call.1']
    #allocation5 [shape = 's32[1]{0}', space=sflag, size = 0x4, scoped, tag = 'scoped memory for tpu_custom_call.1']
    #allocation6 [shape = 'u8[32768]{0}', space=vmem, size = 0x8000, scoped, tag = 'input window, operand 1, single buffered']
    #allocation7 [shape = 's32[1]{0}', space=sflag, size = 0x4, scoped, tag = 'scoped memory for tpu_custom_call.1']
    #allocation8 [shape = 'u8[4096]{0}', space=vmem, size = 0x1000, scoped, tag = 'output window, operand 0, single buffered']
    %7 = vsyncpa [#allocation4], 0
    %8 = vsyncpa [#allocation7], 0
    %9 = vsyncpa [#allocation5], 0
    // Predicated region
    $region2: #{tpu_custom_call.1} parent=1 // pred_check
      _
    $region3: #{tpu_custom_call.1} parent=1 // pred_check_branch
      %11 = sbr.rel (0) target = $region5
    $region4: #{tpu_custom_call.1} parent=1 // pred_region
      %13 = vsyncadd [#allocation4], 0
      %s14 = sshll.u32 %s0, 4
      %s15 = int_to_ptr.hbm [resolvable:$true] %s14
      %s16 = sshll.u32 [#allocation3], 4
      %s17 = int_to_ptr.vmem [resolvable:$true] %s16
      %22 = dma.hbm_to_vmem [thread:$0]  %s15, 128, %s17, [#allocation4], 64, 64, 4
    $region5: #{tpu_custom_call.1} parent=1 // pred_fallthru
      _
    // Predicated region
    $region6: #{tpu_custom_call.1} parent=1 // pred_check
      _
    $region7: #{tpu_custom_call.1} parent=1 // pred_check_branch
      %24 = sbr.rel (0) target = $region9
    $region8: #{tpu_custom_call.1} parent=1 // pred_region
      %26 = vsyncadd [#allocation7], 0
      %s27 = sshll.u32 %s1, 4
      %s28 = int_to_ptr.hbm [resolvable:$true] %s27
      %s29 = sshll.u32 [#allocation6], 4
      %s30 = int_to_ptr.vmem [resolvable:$true] %s29
      %35 = dma.hbm_to_vmem [thread:$0]  %s28, 1024, %s30, [#allocation7], 64, 64, 4
    $region9: #{tpu_custom_call.1} parent=1 // pred_fallthru
      _
    // Predicated region
    $region10: #{tpu_custom_call.1} parent=1 // pred_check
      _
    $region11: #{tpu_custom_call.1} parent=1 // pred_check_branch
      %37 = sbr.rel (0) target = $region13
    $region12: #{tpu_custom_call.1} parent=1 // pred_region
      %39 = dma.done [#allocation4], 128
    $region13: #{tpu_custom_call.1} parent=1 // pred_fallthru
      _
    // Predicated region
    $region14: #{tpu_custom_call.1} parent=1 // pred_check
      _
    $region15: #{tpu_custom_call.1} parent=1 // pred_check_branch
      %41 = sbr.rel (0) target = $region17
    $region16: #{tpu_custom_call.1} parent=1 // pred_region
      %43 = dma.done [#allocation7], 1024
    $region17: #{tpu_custom_call.1} parent=1 // pred_fallthru
      _
    %p44 = scmp.eq.s32.totalorder 0, 0
    // Predicated region
    $region18: #{tpu_custom_call.1} parent=1 // pred_check
      %p45 = pneg %p44
    $region19: #{tpu_custom_call.1} parent=1 // pred_check_branch
      %47 = sbr.rel (%p45) target = $region21
    $region20: #{tpu_custom_call.1} parent=1 // pred_region
      %48 = vst [vmem:[#allocation2] sm:$0xff] 0.0
      %49 = vst [vmem:[#allocation2 + $0x8] sm:$0xff] 0.0
    $region21: #{tpu_custom_call.1} parent=1 // pred_fallthru
      _
    %s50 = smul.u32 0, 128
    %v51 = vld [vmem:[#allocation2] sm:$0xff]
    %v52 = vld [vmem:[#allocation2 + $0x8] sm:$0xff]
    %s53 = sshra.s32 %s50, 7
    %s54 = sand.u32 %s50, 127
    %s55 = smul.addr %s53, 4
    %s56 = scalar_lea.vmem [#allocation3], %s55
    %v57 = vld [vmem:[%s56] sm:$0xf]
    %v58 = vld [vmem:[%s56 + $0x4] sm:$0xf]
    %v59 = vld [vmem:[#allocation6] sm:$0xf]
    %v60 = vld [vmem:[#allocation6 + $0x4] sm:$0xf]
    %v61 = vld [vmem:[#allocation6 + $0x8] sm:$0xf]
    %v62 = vld [vmem:[#allocation6 + $0xc] sm:$0xf]
    %v63 = vld [vmem:[#allocation6 + $0x10] sm:$0xf]
    %v64 = vld [vmem:[#allocation6 + $0x14] sm:$0xf]
    %v65 = vld [vmem:[#allocation6 + $0x18] sm:$0xf]
    %v66 = vld [vmem:[#allocation6 + $0x1c] sm:$0xf]
    %v67 = vld [vmem:[#allocation6 + $0x20] sm:$0xf]
    %v68 = vld [vmem:[#allocation6 + $0x24] sm:$0xf]
    %v69 = vld [vmem:[#allocation6 + $0x28] sm:$0xf]
    %v70 = vld [vmem:[#allocation6 + $0x2c] sm:$0xf]
    %v71 = vld [vmem:[#allocation6 + $0x30] sm:$0xf]
    %v72 = vld [vmem:[#allocation6 + $0x34] sm:$0xf]
    %v73 = vld [vmem:[#allocation6 + $0x38] sm:$0xf]
    %v74 = vld [vmem:[#allocation6 + $0x3c] sm:$0xf]
    %v77 = vunpack.c.l.b16 %v57
    %v78 = vunpack.c.l.b16 %v58
    %v79 = vpack.c.b16 %v78, %v77
    %v97 = vunpack.c.l.b16 %v59
    %v98 = vunpack.c.l.b16 %v60
    %v99 = vunpack.c.l.b16 %v61
    %v100 = vunpack.c.l.b16 %v62
    %v101 = vunpack.c.l.b16 %v63
    %v102 = vunpack.c.l.b16 %v64
    %v103 = vunpack.c.l.b16 %v65
    %v104 = vunpack.c.l.b16 %v66
    %v105 = vunpack.c.l.b16 %v67
    %v106 = vunpack.c.l.b16 %v68
    %v107 = vunpack.c.l.b16 %v69
    %v108 = vunpack.c.l.b16 %v70
    %v109 = vunpack.c.l.b16 %v71
    %v110 = vunpack.c.l.b16 %v72
    %v111 = vunpack.c.l.b16 %v73
    %v112 = vunpack.c.l.b16 %v74
    %v113 = vpack.c.b16 %v98, %v97
    %v114 = vpack.c.b16 %v100, %v99
    %v115 = vpack.c.b16 %v102, %v101
    %v116 = vpack.c.b16 %v104, %v103
    %v117 = vpack.c.b16 %v106, %v105
    %v118 = vpack.c.b16 %v108, %v107
    %v119 = vpack.c.b16 %v110, %v109
    %v120 = vpack.c.b16 %v112, %v111
    %129 = vmatpush.bf16.msra.mxu0 %v120
    %130 = vmatpush.bf16.msra.mxu0 %v119
    %131 = vmatpush.bf16.msra.mxu0 %v118
    %132 = vmatpush.bf16.msra.mxu0 %v117
    %133 = vmatpush.bf16.msra.mxu0 %v116
    %134 = vmatpush.bf16.msra.mxu0 %v115
    %135 = vmatpush.bf16.msra.mxu0 %v114
    %136 = vmatpush.bf16.msra.mxu0 %v113
    %137 = vmatmul.bf16.gmra.mxu0 %v79
    %v138 = vpop.f32.mrf.mxu0
    %v139 = vadd.f32 0.0, %v138
    %v140 = vpop.f32.mrf.mxu0
    %v141 = vadd.f32 0.0, %v140
    %142 = vdwg.mxu0
    %v143 = vadd.f32 %v51, %v139
    %v144 = vadd.f32 %v52, %v141
    %145 = vst [vmem:[#allocation2] sm:$0xff] %v143
    %146 = vst [vmem:[#allocation2 + $0x8] sm:$0xff] %v144
    // Predicated region
    $region22: #{tpu_custom_call.1} parent=1 // pred_check
      %p147 = pneg %p44
    $region23: #{tpu_custom_call.1} parent=1 // pred_check_branch
      %149 = sbr.rel (%p147) target = $region25
    $region24: #{tpu_custom_call.1} parent=1 // pred_region
      %v150 = vld [vmem:[#allocation2] sm:$0xff]
      %v151 = vld [vmem:[#allocation2 + $0x8] sm:$0xff]
      %v152 = vpack.c.bf16 %v150, %v150
      %v153 = vpack.c.bf16 %v151, %v151
      %154 = vst [vmem:[#allocation8] sm:$0xf] %v152
      %155 = vst [vmem:[#allocation8 + $0x4] sm:$0xf] %v153
    $region25: #{tpu_custom_call.1} parent=1 // pred_fallthru
      _
    // Predicated region
    $region26: #{tpu_custom_call.1} parent=1 // pred_check
      _
    $region27: #{tpu_custom_call.1} parent=1 // pred_check_branch
      %157 = sbr.rel (0) target = $region29
    $region28: #{tpu_custom_call.1} parent=1 // pred_region
      %159 = vsyncadd [#allocation5], 0
      %s160 = sshll.u32 [#allocation8], 4
      %s161 = int_to_ptr.vmem [resolvable:$true] %s160
      %s162 = sshll.u32 %s2, 4
      %s163 = int_to_ptr.hbm [resolvable:$true] %s162
      %168 = dma.vmem_to_hbm [thread:$0]  %s161, 128, %s163, [#allocation5], 64, 64, 4
    $region29: #{tpu_custom_call.1} parent=1 // pred_fallthru
      _
    // Predicated region
    $region30: #{tpu_custom_call.1} parent=1 // pred_check
      _
    $region31: #{tpu_custom_call.1} parent=1 // pred_check_branch
      %170 = sbr.rel (0) target = $region33
    $region32: #{tpu_custom_call.1} parent=1 // pred_region
      %172 = dma.done [#allocation5], 128
    $region33: #{tpu_custom_call.1} parent=1 // pred_fallthru
      _
    %173 = vsyncpa [#allocation4], 1
    %174 = vsyncpa [#allocation7], 1
    %175 = vsyncpa [#allocation5], 1

</llo_original>
